<compile_context>
chip_gen: v5e
topology: v5e:2x2
jax: 0.10.0
libtpu: 0.0.40
codegen_flags: <defaults>
</compile_context>

<pallas_src>
import jax
import jax.numpy as jnp
from jax.experimental import pallas as pl
from jax.experimental.pallas import tpu as pltpu


# -----------------------------------------------------------------------------
# Pallas kernel: per row-tile, sum the 2K neighbor-slot chunks (full-width
# adds), one block-diagonal matmul, folded 2*bias, residual, full-lane store.
# -----------------------------------------------------------------------------
def gcn_kernel(node_ref, slab_ref, w_ref, b_ref, o_ref):
    CH = w_ref.shape[0]                       # P * 2D  (256 for D=32)
    S = slab_ref.shape[1] // CH               # 2K neighbor slots

    acc = slab_ref[:, 0:CH].astype(jnp.float32)
    for j in range(1, S):                     # static & small: unrolled
        acc = acc + slab_ref[:, j * CH:(j + 1) * CH]

    # [s_p | ...] @ blkdiag(W_full x P)  ==  per-node  (in_sum + out_sum) @ W_full
    h = jnp.dot(acc, w_ref[...], preferred_element_type=jnp.float32)
    o_ref[...] = (node_ref[...] + h + b_ref[...]).astype(o_ref.dtype)


def _pick_tile_rows(R, cap=256):
    """Largest multiple-of-8 tile that divides R (capped), keeping >= 2 grid
    steps when R allows so v7x's two TensorCores both get work."""
    t = min(cap, R)
    t -= t % 8
    while t >= 8:
        if R % t == 0 and (R // t >= 2 or R <= 8):
            return t
        t -= 8
    return R


def gcn_forward_pallas(node_reps, in_indices, in_edges, in_mask,
                       out_indices, out_edges, out_mask,
                       edge_table, w_full, bias, *, tile_cap=256):
    """Matches GCN.forward for batch_size == 1 (the module's .squeeze(0) path)."""
    B, N, D = node_reps.shape
    assert B == 1, "reference module squeezes the batch dim; use B = 1"
    K = in_indices.shape[2]
    V = edge_table.shape[0]

    # ---- node packing: P nodes per 128-lane row ------------------------------
    if D <= 128 and 128 % D == 0 and N % (128 // D) == 0:
        P = 128 // D
    else:
        P = 1                                   # fallback: narrower (masked) rows
    R = N // P
    PD = P * D                                  # packed output width (128)
    CH = P * 2 * D                              # packed [nb|ed] width  (256)
    S = 2 * K                                   # merged in+out neighbor slots

    # ---- XLA glue: sentinel-masked gathers into ONE lane-dense slab ----------
    node2 = node_reps[0]                                            # (N, D)
    node_ext = jnp.concatenate([node2, jnp.zeros((1, D), node2.dtype)], axis=0)
    edge_ext = jnp.concatenate([edge_table,
                                jnp.zeros((1, D), edge_table.dtype)], axis=0)

    # masked slots -> sentinel zero rows (masks are {0,1} as in the reference)
    in_idx = jnp.where(in_mask[0] > 0, in_indices[0], N)
    out_idx = jnp.where(out_mask[0] > 0, out_indices[0], N)
    in_eid = jnp.where(in_mask[0] > 0, in_edges[0], V)
    out_eid = jnp.where(out_mask[0] > 0, out_edges[0], V)

    idx_all = jnp.concatenate([in_idx, out_idx], axis=1)            # (N, 2K)
    eid_all = jnp.concatenate([in_eid, out_eid], axis=1)

    # transpose the tiny index tensors (not the gathered floats) so the slab is
    # a free row-major reshape of the gather output
    idx_r = idx_all.reshape(R, P, S).transpose(0, 2, 1)             # (R, 2K, P)
    eid_r = eid_all.reshape(R, P, S).transpose(0, 2, 1)

    nb = node_ext[idx_r]                                            # (R, 2K, P, D)
    ed = edge_ext[eid_r]                                            # (R, 2K, P, D)
    slab = jnp.concatenate([nb, ed], axis=-1).reshape(R, S * CH)    # (R, 2K*P*2D)

    # block-diagonal weight fuses in/out merge, node|edge halves, P-node packing
    w_bd = jnp.kron(jnp.eye(P, dtype=w_full.dtype), w_full)         # (P*2D, P*D)
    bias2 = jnp.tile(2.0 * bias, P).reshape(1, PD)                  # both biases
    node_packed = node2.reshape(R, PD)

    tile = _pick_tile_rows(R, tile_cap)
    grid = (pl.cdiv(R, tile),)

    row_spec = pl.BlockSpec((tile, PD), lambda i: (i, 0))
    slab_spec = pl.BlockSpec((tile, S * CH), lambda i: (i, 0))
    w_spec = pl.BlockSpec((CH, PD), lambda i: (0, 0))
    b_spec = pl.BlockSpec((1, PD), lambda i: (0, 0))

    out_packed = pl.pallas_call(
        gcn_kernel,
        out_shape=jax.ShapeDtypeStruct((R, PD), node_reps.dtype),
        grid_spec=pltpu.PrefetchScalarGridSpec(
            num_scalar_prefetch=0,
            grid=grid,
            in_specs=[row_spec, slab_spec, w_spec, b_spec],
            out_specs=row_spec,
        ),
        compiler_params=pltpu.CompilerParams(
            dimension_semantics=("parallel",)),     # shard tiles over v7x's 2 TCs
    )(node_packed, slab, w_bd, bias2)

    # unpack (R, P*D) -> (N, D) (free row-major reshape), restore batch dim
    return out_packed.reshape(N, D)[None, :, :]


# -----------------------------------------------------------------------------
# Pure-JAX reference mirroring the PyTorch forward exactly
# -----------------------------------------------------------------------------
def gcn_reference(node_reps, in_indices, in_edges, in_mask,
                  out_indices, out_edges, out_mask, edge_table, w_full, bias):
    def collect_neighbors(nr, idx):
        return jax.vmap(lambda r, i: r[i])(nr, idx)

    in_edge_reps = edge_table[in_edges]
    in_node_reps = collect_neighbors(node_reps, in_indices)
    in_reps = jnp.concatenate([in_node_reps, in_edge_reps], axis=3)
    in_reps = in_reps * in_mask[..., None]
    in_reps = in_reps.sum(axis=2)

    out_edge_reps = edge_table[out_edges]
    out_node_reps = collect_neighbors(node_reps, out_indices)
    out_reps = jnp.concatenate([out_node_reps, out_edge_reps], axis=3)
    out_reps = out_reps * out_mask[..., None]
    out_reps = out_reps.sum(axis=2)

    out_nodes = out_reps[0] @ w_full + bias                 # squeeze(0) path (B==1)
    in_nodes = in_reps[0] @ w_full + bias
    return node_reps + out_nodes + in_nodes


if __name__ == "__main__":
    B, N, K, D = 1, 512, 4, 32
    EDGE_VOCAB = 10

    key = jax.random.PRNGKey(0)
    k1, k2, k3, k4, k5, k6, k7, k8, k9 = jax.random.split(key, 9)

    node_reps = jax.random.normal(k1, (B, N, D), dtype=jnp.float32)
    in_indices = jax.random.randint(k2, (B, N, K), 0, N, dtype=jnp.int32)
    in_edges = jax.random.randint(k3, (B, N, K), 0, EDGE_VOCAB, dtype=jnp.int32)
    in_mask = (jax.random.uniform(k4, (B, N, K)) > 0.3).astype(jnp.float32)
    out_indices = jax.random.randint(k5, (B, N, K), 0, N, dtype=jnp.int32)
    out_edges = jax.random.randint(k6, (B, N, K), 0, EDGE_VOCAB, dtype=jnp.int32)
    out_mask = (jax.random.uniform(k7, (B, N, K)) > 0.3).astype(jnp.float32)

    # Parameters (deterministic init): embedding table (V, D), Linear(2D -> D)
    # stored as w_full (2D, D) == torch_weight.T, plus bias (D,)
    edge_table = jax.random.normal(k8, (EDGE_VOCAB, D), dtype=jnp.float32) * 0.1
    kw, kb = jax.random.split(k9)
    w_full = jax.random.normal(kw, (2 * D, D), dtype=jnp.float32) * 0.05
    bias = jax.random.normal(kb, (D,), dtype=jnp.float32) * 0.01

    out = gcn_forward_pallas(node_reps, in_indices, in_edges, in_mask,
                             out_indices, out_edges, out_mask,
                             edge_table, w_full, bias)
    out = jax.block_until_ready(out)

    ref = gcn_reference(node_reps, in_indices, in_edges, in_mask,
                        out_indices, out_edges, out_mask,
                        edge_table, w_full, bias)
    assert out.shape == (B, N, D)
    assert jnp.allclose(out, ref, atol=1e-4, rtol=1e-4), "mismatch vs reference"

    print("KERNEL_OK")
</pallas_src>

<mosaic_0001>
module attributes {stable_mosaic.version = 11 : i64} {
  func.func @gcn_kernel(%arg0: i32, %arg1: memref<64x128xf32, #tpu.memory_space<vmem>>, %arg2: memref<64x2048xf32, #tpu.memory_space<vmem>>, %arg3: memref<256x128xf32, #tpu.memory_space<vmem>>, %arg4: memref<1x128xf32, #tpu.memory_space<vmem>>, %arg5: memref<64x128xf32, #tpu.memory_space<vmem>>) attributes {dimension_semantics = [#tpu.dimension_semantics<parallel>], iteration_bounds = array<i64: 2>, scalar_prefetch = 0 : i64, scratch_operands = 0 : i64, tpu.core_type = #tpu.core_type<tc>, window_params = [{transform_indices = @transform_0, window_bounds = array<i64: 64, 128>}, {transform_indices = @transform_1, window_bounds = array<i64: 64, 2048>}, {pipeline_mode = #tpu.pipeline_mode<synchronous>, transform_indices = @transform_2, window_bounds = array<i64: 256, 128>}, {pipeline_mode = #tpu.pipeline_mode<synchronous>, transform_indices = @transform_3, window_bounds = array<i64: 1, 128>}, {transform_indices = @transform_4, window_bounds = array<i64: 64, 128>}]} {
    %c0 = arith.constant 0 : index
    %c0_0 = arith.constant 0 : index
    %0 = vector.load %arg2[%c0, %c0_0] : memref<64x2048xf32, #tpu.memory_space<vmem>>, vector<64x256xf32>
    %c0_1 = arith.constant 0 : index
    %c256 = arith.constant 256 : index
    %1 = vector.load %arg2[%c0_1, %c256] : memref<64x2048xf32, #tpu.memory_space<vmem>>, vector<64x256xf32>
    %2 = arith.addf %0, %1 : vector<64x256xf32>
    %c0_2 = arith.constant 0 : index
    %c512 = arith.constant 512 : index
    %3 = vector.load %arg2[%c0_2, %c512] : memref<64x2048xf32, #tpu.memory_space<vmem>>, vector<64x256xf32>
    %4 = arith.addf %2, %3 : vector<64x256xf32>
    %c0_3 = arith.constant 0 : index
    %c768 = arith.constant 768 : index
    %5 = vector.load %arg2[%c0_3, %c768] : memref<64x2048xf32, #tpu.memory_space<vmem>>, vector<64x256xf32>
    %6 = arith.addf %4, %5 : vector<64x256xf32>
    %c0_4 = arith.constant 0 : index
    %c1024 = arith.constant 1024 : index
    %7 = vector.load %arg2[%c0_4, %c1024] : memref<64x2048xf32, #tpu.memory_space<vmem>>, vector<64x256xf32>
    %8 = arith.addf %6, %7 : vector<64x256xf32>
    %c0_5 = arith.constant 0 : index
    %c1280 = arith.constant 1280 : index
    %9 = vector.load %arg2[%c0_5, %c1280] : memref<64x2048xf32, #tpu.memory_space<vmem>>, vector<64x256xf32>
    %10 = arith.addf %8, %9 : vector<64x256xf32>
    %c0_6 = arith.constant 0 : index
    %c1536 = arith.constant 1536 : index
    %11 = vector.load %arg2[%c0_6, %c1536] : memref<64x2048xf32, #tpu.memory_space<vmem>>, vector<64x256xf32>
    %12 = arith.addf %10, %11 : vector<64x256xf32>
    %c0_7 = arith.constant 0 : index
    %c1792 = arith.constant 1792 : index
    %13 = vector.load %arg2[%c0_7, %c1792] : memref<64x2048xf32, #tpu.memory_space<vmem>>, vector<64x256xf32>
    %14 = arith.addf %12, %13 : vector<64x256xf32>
    %c0_8 = arith.constant 0 : index
    %c0_9 = arith.constant 0 : index
    %15 = vector.load %arg3[%c0_8, %c0_9] : memref<256x128xf32, #tpu.memory_space<vmem>>, vector<256x128xf32>
    %cst = arith.constant dense<0.000000e+00> : vector<64x128xf32>
    %16 = tpu.matmul %14, %15, %cst {dimension_numbers = #tpu.dot_dimension_numbers<[1], [0], [0], [1], [0, 0, 1, 1], [], []>} : vector<64x256xf32>, vector<256x128xf32>, vector<64x128xf32> -> vector<64x128xf32>
    %c0_10 = arith.constant 0 : index
    %c0_11 = arith.constant 0 : index
    %17 = vector.load %arg1[%c0_10, %c0_11] : memref<64x128xf32, #tpu.memory_space<vmem>>, vector<64x128xf32>
    %18 = arith.addf %17, %16 : vector<64x128xf32>
    %c0_12 = arith.constant 0 : index
    %c0_13 = arith.constant 0 : index
    %19 = vector.load %arg4[%c0_12, %c0_13] : memref<1x128xf32, #tpu.memory_space<vmem>>, vector<1x128xf32>
    %20 = vector.broadcast %19 : vector<1x128xf32> to vector<64x128xf32>
    %21 = arith.addf %18, %20 : vector<64x128xf32>
    %c0_14 = arith.constant 0 : index
    %c0_15 = arith.constant 0 : index
    %22 = vector.load %arg5[%c0_14, %c0_15] : memref<64x128xf32, #tpu.memory_space<vmem>>, vector<64x128xf32>
    tpu.vector_store %arg5[%c0_14, %c0_15], %21 {strides = array<i32>} : memref<64x128xf32, #tpu.memory_space<vmem>>, vector<64x128xf32>,
    return
  }
  func.func @transform_0(%arg0: i32) -> (i32, i32) {
    %c0_i32 = arith.constant 0 : i32
    %c0_i32_0 = arith.constant 0 : i32
    return %arg0, %c0_i32 : i32, i32
  }
  func.func @transform_1(%arg0: i32) -> (i32, i32) {
    %c0_i32 = arith.constant 0 : i32
    %c0_i32_0 = arith.constant 0 : i32
    return %arg0, %c0_i32 : i32, i32
  }
  func.func @transform_2(%arg0: i32) -> (i32, i32) {
    %c0_i32 = arith.constant 0 : i32
    %c0_i32_0 = arith.constant 0 : i32
    %c0_i32_1 = arith.constant 0 : i32
    return %c0_i32, %c0_i32_0 : i32, i32
  }
  func.func @transform_3(%arg0: i32) -> (i32, i32) {
    %c0_i32 = arith.constant 0 : i32
    %c0_i32_0 = arith.constant 0 : i32
    %c0_i32_1 = arith.constant 0 : i32
    return %c0_i32, %c0_i32_0 : i32, i32
  }
  func.func @transform_4(%arg0: i32) -> (i32, i32) {
    %c0_i32 = arith.constant 0 : i32
    %c0_i32_0 = arith.constant 0 : i32
    return %arg0, %c0_i32 : i32, i32
  }
}

</mosaic_0001>

<llo_original>
// kernel: tpu_custom_call.1
$region0: #{tpu_custom_call.1}
  #allocation0 [shape = 'u32[]', space=smem, size = 0x4, offset = 0x4, fixed_abs, tag = 'smem constant byte address 0x4 - core index']
  #allocation1 [shape = 'u32[72,128]{1,0:T(1,128)}', space=vmem, size = 0x9000, scoped, tag = 'internal scratch']
  %s0 = inlined_call_operand.hbm [shape: f32[128,128], index: 0, kind: input, shape index: {}]
  %s1 = inlined_call_operand.hbm [shape: f32[128,2048], index: 1, kind: input, shape index: {}]
  %s2 = inlined_call_operand.hbm [shape: f32[256,128], index: 2, kind: input, shape index: {}]
  %s3 = inlined_call_operand.vmem [shape: f32[1,128], index: 3, kind: input, shape index: {}]
  %s4 = inlined_call_operand.hbm [shape: f32[128,128], index: 4, kind: output, shape index: {}]
  %s5 = sld [smem:[#allocation0]]
  $region61: #{tpu_custom_call.1} parent=0
    _
  %s7 = ssub.s32 1, %s5
  %s8 = scalar_select 0, %s7, %s5
  $region1: #{tpu_custom_call.1} parent=0
    #allocation2 [shape = 'u8[65536]{0}', space=vmem, size = 0x10000, scoped, tag = 'input window, operand 0']
    #allocation3 [shape = 's32[2]{0}', space=sflag, size = 0x8, scoped, tag = 'scoped memory for tpu_custom_call.1']
    #allocation4 [shape = 's32[2]{0}', space=sflag, size = 0x8, scoped, tag = 'scoped memory for tpu_custom_call.1']
    #allocation5 [shape = 'u8[1048576]{0}', space=vmem, size = 0x100000, scoped, tag = 'input window, operand 1']
    #allocation6 [shape = 's32[2]{0}', space=sflag, size = 0x8, scoped, tag = 'scoped memory for tpu_custom_call.1']
    #allocation7 [shape = 'u8[131072]{0}', space=vmem, size = 0x20000, scoped, tag = 'input window, operand 2, single buffered']
    #allocation8 [shape = 'u8[65536]{0}', space=vmem, size = 0x10000, scoped, tag = 'output window, operand 0']
    %9 = vsyncpa [#allocation3], 0
    %s10 = scalar_lea.sflag [#allocation3], 1
    %11 = vsyncpa %s10, 0
    %12 = vsyncpa [#allocation6], 0
    %s13 = scalar_lea.sflag [#allocation6], 1
    %14 = vsyncpa %s13, 0
    %15 = vsyncpa [#allocation4], 0
    %s16 = scalar_lea.sflag [#allocation4], 1
    %17 = vsyncpa %s16, 0
    loop: start=0, step=1, limit=4
    $region2: #{tpu_custom_call.1} parent=1 // loop_pre_header
      _
    $region3: #{tpu_custom_call.1} parent=1 // loop_header
      %s19 = sphi 0, %s23
      %p20 = scmp.ge.s32.totalorder %s19, 4
      %s29 = sphi 0, %s31
      %s32 = sphi 0, %s29
      %s33 = sphi 0, %s32
      %s49 = sphi 0, %s33
      %s55 = sphi 0, %s57
      %s58 = sphi 0, %s55
      %s59 = sphi 0, %s58
      %s75 = sphi 0, %s59
      %s79 = sphi 0, %s79
      %s81 = sphi 0, %s79
      %s82 = sphi 0, %s81
      %s96 = sphi 0, %s82
      %s100 = sphi 0, %s100
      %s102 = sphi 0, %s100
      %s103 = sphi 0, %s102
      %s117 = sphi 0, %s103
      %s123 = sphi 0, %s125
      %s126 = sphi 0, %s123
      %s127 = sphi 0, %s126
      %s143 = sphi 0, %s127
    $region4: #{tpu_custom_call.1} parent=1 // loop_header_branch
      %22 = sbr.rel (%p20) target = $region8
    $region5: #{tpu_custom_call.1} parent=1 // loop_body
      %s24 = ssub.s32 %s19, 1
      %s25 = ssub.s32 %s19, 2
      %s26 = sadd.s32 %s19, 1
      %s27 = ssub.s32 %s19, %s26
      %p28 = scmp.eq.s32.totalorder %s27, 0
      %s30 = sadd.s32 %s29, 1
      %s31 = scalar_select %p28, %s29, %s30
      %p34 = pneg %p28
      %p35 = scmp.eq.s32.totalorder %s19, 1
      %p36 = por %p34, %p35
      %p37 = scmp.ne.s32.totalorder %s29, %s32
      %p38 = scmp.eq.s32.totalorder %s19, 0
      %p39 = por %p37, %p38
      %p40 = scmp.ne.s32.totalorder %s29, %s32
      %p41 = scmp.eq.s32.totalorder %s24, 1
      %p42 = por %p40, %p41
      %p43 = scmp.ne.s32.totalorder %s32, %s33
      %p44 = scmp.eq.s32.totalorder %s24, 0
      %p45 = por %p43, %p44
      %p46 = scmp.ne.s32.totalorder %s32, %s33
      %p47 = scmp.eq.s32.totalorder %s25, 1
      %p48 = por %p46, %p47
      %p50 = scmp.ne.s32.totalorder %s33, %s49
      %p51 = scmp.eq.s32.totalorder %s25, 0
      %p52 = por %p50, %p51
      %s53 = ssub.s32 %s19, %s26
      %p54 = scmp.eq.s32.totalorder %s53, 0
      %s56 = sadd.s32 %s55, 1
      %s57 = scalar_select %p54, %s55, %s56
      %p60 = pneg %p54
      %p61 = scmp.eq.s32.totalorder %s19, 1
      %p62 = por %p60, %p61
      %p63 = scmp.ne.s32.totalorder %s55, %s58
      %p64 = scmp.eq.s32.totalorder %s19, 0
      %p65 = por %p63, %p64
      %p66 = scmp.ne.s32.totalorder %s55, %s58
      %p67 = scmp.eq.s32.totalorder %s24, 1
      %p68 = por %p66, %p67
      %p69 = scmp.ne.s32.totalorder %s58, %s59
      %p70 = scmp.eq.s32.totalorder %s24, 0
      %p71 = por %p69, %p70
      %p72 = scmp.ne.s32.totalorder %s58, %s59
      %p73 = scmp.eq.s32.totalorder %s25, 1
      %p74 = por %p72, %p73
      %p76 = scmp.ne.s32.totalorder %s59, %s75
      %p77 = scmp.eq.s32.totalorder %s25, 0
      %p78 = por %p76, %p77
      %s80 = sadd.s32 %s79, 1
      %p83 = scmp.eq.s32.totalorder %s19, 1
      %p84 = scmp.ne.s32.totalorder %s79, %s81
      %p85 = scmp.eq.s32.totalorder %s19, 0
      %p86 = por %p84, %p85
      %p87 = scmp.ne.s32.totalorder %s79, %s81
      %p88 = scmp.eq.s32.totalorder %s24, 1
      %p89 = por %p87, %p88
      %p90 = scmp.ne.s32.totalorder %s81, %s82
      %p91 = scmp.eq.s32.totalorder %s24, 0
      %p92 = por %p90, %p91
      %p93 = scmp.ne.s32.totalorder %s81, %s82
      %p94 = scmp.eq.s32.totalorder %s25, 1
      %p95 = por %p93, %p94
      %p97 = scmp.ne.s32.totalorder %s82, %s96
      %p98 = scmp.eq.s32.totalorder %s25, 0
      %p99 = por %p97, %p98
      %s101 = sadd.s32 %s100, 1
      %p104 = scmp.eq.s32.totalorder %s19, 1
      %p105 = scmp.ne.s32.totalorder %s100, %s102
      %p106 = scmp.eq.s32.totalorder %s19, 0
      %p107 = por %p105, %p106
      %p108 = scmp.ne.s32.totalorder %s100, %s102
      %p109 = scmp.eq.s32.totalorder %s24, 1
      %p110 = por %p108, %p109
      %p111 = scmp.ne.s32.totalorder %s102, %s103
      %p112 = scmp.eq.s32.totalorder %s24, 0
      %p113 = por %p111, %p112
      %p114 = scmp.ne.s32.totalorder %s102, %s103
      %p115 = scmp.eq.s32.totalorder %s25, 1
      %p116 = por %p114, %p115
      %p118 = scmp.ne.s32.totalorder %s103, %s117
      %p119 = scmp.eq.s32.totalorder %s25, 0
      %p120 = por %p118, %p119
      %s121 = ssub.s32 %s19, %s26
      %p122 = scmp.eq.s32.totalorder %s121, 0
      %s124 = sadd.s32 %s123, 1
      %s125 = scalar_select %p122, %s123, %s124
      %p128 = pneg %p122
      %p129 = scmp.eq.s32.totalorder %s19, 1
      %p130 = por %p128, %p129
      %p131 = scmp.ne.s32.totalorder %s123, %s126
      %p132 = scmp.eq.s32.totalorder %s19, 0
      %p133 = por %p131, %p132
      %p134 = scmp.ne.s32.totalorder %s123, %s126
      %p135 = scmp.eq.s32.totalorder %s24, 1
      %p136 = por %p134, %p135
      %p137 = scmp.ne.s32.totalorder %s126, %s127
      %p138 = scmp.eq.s32.totalorder %s24, 0
      %p139 = por %p137, %p138
      %p140 = scmp.ne.s32.totalorder %s126, %s127
      %p141 = scmp.eq.s32.totalorder %s25, 1
      %p142 = por %p140, %p141
      %p144 = scmp.ne.s32.totalorder %s127, %s143
      %p145 = scmp.eq.s32.totalorder %s25, 0
      %p146 = por %p144, %p145
      %p147 = scmp.le.s32.totalorder 1, %s19
      %p148 = scmp.lt.s32.totalorder %s19, 3
      %p149 = pnand %p147, %p148
      %p150 = pneg %p149
      // Predicated region
      $region9: #{tpu_custom_call.1} parent=5 // pred_check
        _
      $region10: #{tpu_custom_call.1} parent=5 // pred_check_branch
        %152 = sbr.rel (%p149) target = $region12
      $region11: #{tpu_custom_call.1} parent=5 // pred_region
        %s153 = ssub.s32 %s19, 1
        // Predicated region
        $region13: #{tpu_custom_call.1} parent=11 // pred_check
          %p154 = pneg %p92
        $region14: #{tpu_custom_call.1} parent=11 // pred_check_branch
          %156 = sbr.rel (%p154) target = $region16
        $region15: #{tpu_custom_call.1} parent=11 // pred_region
          %158 = vsyncadd [#allocation6], 0
          %s159 = sshll.u32 %s2, 4
          %s160 = int_to_ptr.hbm [resolvable:$true] %s159
          %s161 = sshll.u32 [#allocation7], 4
          %s162 = int_to_ptr.vmem [resolvable:$true] %s161
          %167 = dma.hbm_to_vmem [thread:$0]  %s160, 4096, %s162, [#allocation6], 128, 128, 8
        $region16: #{tpu_custom_call.1} parent=11 // pred_fallthru
          _
        // Predicated region
        $region17: #{tpu_custom_call.1} parent=11 // pred_check
          %p168 = pneg %p113
        $region18: #{tpu_custom_call.1} parent=11 // pred_check_branch
          %170 = sbr.rel (%p168) target = $region20
        $region19: #{tpu_custom_call.1} parent=11 // pred_region
          _
        $region20: #{tpu_custom_call.1} parent=11 // pred_fallthru
          _
      $region12: #{tpu_custom_call.1} parent=5 // pred_fallthru
        _
      %p171 = scmp.lt.s32.totalorder %s19, 2
      // Predicated region
      $region21: #{tpu_custom_call.1} parent=5 // pred_check
        %p172 = pneg %p171
      $region22: #{tpu_custom_call.1} parent=5 // pred_check_branch
        %174 = sbr.rel (%p172) target = $region24
      $region23: #{tpu_custom_call.1} parent=5 // pred_region
        // Predicated region
        $region25: #{tpu_custom_call.1} parent=23 // pred_check
          %p175 = pneg %p39
        $region26: #{tpu_custom_call.1} parent=23 // pred_check_branch
          %177 = sbr.rel (%p175) target = $region28
        $region27: #{tpu_custom_call.1} parent=23 // pred_region
          %s178 = sand.u32 %s29, 1
          %s179 = scalar_lea.sflag [#allocation3], %s178
          %s180 = sand.u32 %s29, 1
          %s181 = smul.addr %s180, 64
          %s182 = scalar_lea.vmem [#allocation2], %s181
          %s183 = smul.u32 8, %s19
          %185 = vsyncadd %s179, 0
          %s186 = smul.addr %s183, 8
          %s187 = scalar_lea.hbm %s0, %s186
          %s188 = sshll.u32 %s187, 4
          %s189 = int_to_ptr.hbm [resolvable:$true] %s188
          %s190 = sshll.u32 %s182, 4
          %s191 = int_to_ptr.vmem [resolvable:$true] %s190
          %196 = dma.hbm_to_vmem [thread:$0]  %s189, 1024, %s191, %s179, 128, 128, 8
        $region28: #{tpu_custom_call.1} parent=23 // pred_fallthru
          _
        // Predicated region
        $region29: #{tpu_custom_call.1} parent=23 // pred_check
          %p197 = pneg %p65
        $region30: #{tpu_custom_call.1} parent=23 // pred_check_branch
          %199 = sbr.rel (%p197) target = $region32
        $region31: #{tpu_custom_call.1} parent=23 // pred_region
          %s200 = sand.u32 %s19, 1
          %s201 = scalar_lea.sflag [#allocation6], %s200
          %s202 = sand.u32 %s55, 1
          %s203 = smul.addr %s202, 1024
          %s204 = scalar_lea.vmem [#allocation5], %s203
          %s205 = smul.u32 8, %s19
          %207 = vsyncadd %s201, 0
          %s208 = smul.addr %s205, 16
          %s209 = smul.addr %s208, 8
          %s210 = scalar_lea.hbm %s1, %s209
          %s211 = sshll.u32 %s210, 4
          %s212 = int_to_ptr.hbm [resolvable:$true] %s211
          %s213 = sshll.u32 %s204, 4
          %s214 = int_to_ptr.vmem [resolvable:$true] %s213
          %219 = dma.hbm_to_vmem [thread:$0]  %s212, 16384, %s214, %s201, 2048, 2048, 128
        $region32: #{tpu_custom_call.1} parent=23 // pred_fallthru
          _
      $region24: #{tpu_custom_call.1} parent=5 // pred_fallthru
        _
      %p220 = scmp.le.s32.totalorder 1, %s19
      %p221 = scmp.lt.s32.totalorder %s19, 3
      %p222 = pnand %p220, %p221
      %p223 = pneg %p222
      // Predicated region
      $region33: #{tpu_custom_call.1} parent=5 // pred_check
        _
      $region34: #{tpu_custom_call.1} parent=5 // pred_check_branch
        %225 = sbr.rel (%p222) target = $region36
      $region35: #{tpu_custom_call.1} parent=5 // pred_region
        %s226 = ssub.s32 %s19, 1
        %s227 = sand.u32 %s32, 1
        %s228 = scalar_lea.sflag [#allocation3], %s227
        %s229 = sand.u32 %s32, 1
        %s230 = smul.addr %s229, 64
        %s231 = scalar_lea.vmem [#allocation2], %s230
        // Predicated region
        $region37: #{tpu_custom_call.1} parent=35 // pred_check
          %p232 = pneg %p45
        $region38: #{tpu_custom_call.1} parent=35 // pred_check_branch
          %234 = sbr.rel (%p232) target = $region40
        $region39: #{tpu_custom_call.1} parent=35 // pred_region
          %236 = dma.done %s228, 1024
        $region40: #{tpu_custom_call.1} parent=35 // pred_fallthru
          _
        %s237 = sand.u32 %s24, 1
        %s238 = scalar_lea.sflag [#allocation6], %s237
        %s239 = sand.u32 %s58, 1
        %s240 = smul.addr %s239, 1024
        %s241 = scalar_lea.vmem [#allocation5], %s240
        // Predicated region
        $region41: #{tpu_custom_call.1} parent=35 // pred_check
          %p242 = pneg %p71
        $region42: #{tpu_custom_call.1} parent=35 // pred_check_branch
          %244 = sbr.rel (%p242) target = $region44
        $region43: #{tpu_custom_call.1} parent=35 // pred_region
          %246 = dma.done %s238, 16384
        $region44: #{tpu_custom_call.1} parent=35 // pred_fallthru
          _
        // Predicated region
        $region45: #{tpu_custom_call.1} parent=35 // pred_check
          %p247 = pneg %p92
        $region46: #{tpu_custom_call.1} parent=35 // pred_check_branch
          %249 = sbr.rel (%p247) target = $region48
        $region47: #{tpu_custom_call.1} parent=35 // pred_region
          %251 = dma.done [#allocation6], 4096
        $region48: #{tpu_custom_call.1} parent=35 // pred_fallthru
          _
        %s252 = sand.u32 %s32, 1
        %s253 = scalar_lea.sflag [#allocation3], %s252
        %s254 = sand.u32 %s32, 1
        %s255 = smul.addr %s254, 64
        %s256 = scalar_lea.vmem [#allocation2], %s255
        %p257 = pneg %p45
        %p258 = pneg %p42
        %s259 = sand.u32 %s24, 1
        %s260 = scalar_lea.sflag [#allocation6], %s259
        %s261 = sand.u32 %s58, 1
        %s262 = smul.addr %s261, 1024
        %s263 = scalar_lea.vmem [#allocation5], %s262
        %p264 = pneg %p71
        %p265 = pneg %p68
        %p266 = pneg %p92
        %p267 = pneg %p89
        %p268 = pneg %p113
        %p269 = pneg %p110
        %p270 = pneg %p139
        %p271 = pneg %p136
        %s272 = sand.u32 %s126, 1
        %s273 = scalar_lea.sflag [#allocation4], %s272
        %s274 = sand.u32 %s126, 1
        %s275 = smul.addr %s274, 64
        %s276 = scalar_lea.vmem [#allocation8], %s275
        %s277 = smul.u32 8, %s24
        %s278 = smul.u32 8, %s24
        %s279 = smul.u32 8, %s24
        %v280 = vld [vmem:[%s241] sm:$0xff]
        %v281 = vld [vmem:[%s241 + $0x8] sm:$0xff]
        %v282 = vld [vmem:[%s241 + $0x80] sm:$0xff]
        %v283 = vld [vmem:[%s241 + $0x88] sm:$0xff]
        %v284 = vld [vmem:[%s241 + $0x100] sm:$0xff]
        %v285 = vld [vmem:[%s241 + $0x108] sm:$0xff]
        %v286 = vld [vmem:[%s241 + $0x180] sm:$0xff]
        %v287 = vld [vmem:[%s241 + $0x188] sm:$0xff]
        %v288 = vld [vmem:[%s241 + $0x200] sm:$0xff]
        %v289 = vld [vmem:[%s241 + $0x208] sm:$0xff]
        %v290 = vld [vmem:[%s241 + $0x280] sm:$0xff]
        %v291 = vld [vmem:[%s241 + $0x288] sm:$0xff]
        %v292 = vld [vmem:[%s241 + $0x300] sm:$0xff]
        %v293 = vld [vmem:[%s241 + $0x308] sm:$0xff]
        %v294 = vld [vmem:[%s241 + $0x380] sm:$0xff]
        %v295 = vld [vmem:[%s241 + $0x388] sm:$0xff]
        %v296 = vld [vmem:[%s241 + $0x10] sm:$0xff]
        %v297 = vld [vmem:[%s241 + $0x18] sm:$0xff]
        %v298 = vld [vmem:[%s241 + $0x90] sm:$0xff]
        %v299 = vld [vmem:[%s241 + $0x98] sm:$0xff]
        %v300 = vld [vmem:[%s241 + $0x110] sm:$0xff]
        %v301 = vld [vmem:[%s241 + $0x118] sm:$0xff]
        %v302 = vld [vmem:[%s241 + $0x190] sm:$0xff]
        %v303 = vld [vmem:[%s241 + $0x198] sm:$0xff]
        %v304 = vld [vmem:[%s241 + $0x210] sm:$0xff]
        %v305 = vld [vmem:[%s241 + $0x218] sm:$0xff]
        %v306 = vld [vmem:[%s241 + $0x290] sm:$0xff]
        %v307 = vld [vmem:[%s241 + $0x298] sm:$0xff]
        %v308 = vld [vmem:[%s241 + $0x310] sm:$0xff]
        %v309 = vld [vmem:[%s241 + $0x318] sm:$0xff]
        %v310 = vld [vmem:[%s241 + $0x390] sm:$0xff]
        %v311 = vld [vmem:[%s241 + $0x398] sm:$0xff]
        %v312 = vadd.f32 %v280, %v296
        %v313 = vadd.f32 %v281, %v297
        %v314 = vadd.f32 %v282, %v298
        %v315 = vadd.f32 %v283, %v299
        %v316 = vadd.f32 %v284, %v300
        %v317 = vadd.f32 %v285, %v301
        %v318 = vadd.f32 %v286, %v302
        %v319 = vadd.f32 %v287, %v303
        %v320 = vadd.f32 %v288, %v304
        %v321 = vadd.f32 %v289, %v305
        %v322 = vadd.f32 %v290, %v306
        %v323 = vadd.f32 %v291, %v307
        %v324 = vadd.f32 %v292, %v308
        %v325 = vadd.f32 %v293, %v309
        %v326 = vadd.f32 %v294, %v310
        %v327 = vadd.f32 %v295, %v311
        %v328 = vld [vmem:[%s241 + $0x20] sm:$0xff]
        %v329 = vld [vmem:[%s241 + $0x28] sm:$0xff]
        %v330 = vld [vmem:[%s241 + $0xa0] sm:$0xff]
        %v331 = vld [vmem:[%s241 + $0xa8] sm:$0xff]
        %v332 = vld [vmem:[%s241 + $0x120] sm:$0xff]
        %v333 = vld [vmem:[%s241 + $0x128] sm:$0xff]
        %v334 = vld [vmem:[%s241 + $0x1a0] sm:$0xff]
        %v335 = vld [vmem:[%s241 + $0x1a8] sm:$0xff]
        %v336 = vld [vmem:[%s241 + $0x220] sm:$0xff]
        %v337 = vld [vmem:[%s241 + $0x228] sm:$0xff]
        %v338 = vld [vmem:[%s241 + $0x2a0] sm:$0xff]
        %v339 = vld [vmem:[%s241 + $0x2a8] sm:$0xff]
        %v340 = vld [vmem:[%s241 + $0x320] sm:$0xff]
        %v341 = vld [vmem:[%s241 + $0x328] sm:$0xff]
        %v342 = vld [vmem:[%s241 + $0x3a0] sm:$0xff]
        %v343 = vld [vmem:[%s241 + $0x3a8] sm:$0xff]
        %v344 = vadd.f32 %v312, %v328
        %v345 = vadd.f32 %v313, %v329
        %v346 = vadd.f32 %v314, %v330
        %v347 = vadd.f32 %v315, %v331
        %v348 = vadd.f32 %v316, %v332
        %v349 = vadd.f32 %v317, %v333
        %v350 = vadd.f32 %v318, %v334
        %v351 = vadd.f32 %v319, %v335
        %v352 = vadd.f32 %v320, %v336
        %v353 = vadd.f32 %v321, %v337
        %v354 = vadd.f32 %v322, %v338
        %v355 = vadd.f32 %v323, %v339
        %v356 = vadd.f32 %v324, %v340
        %v357 = vadd.f32 %v325, %v341
        %v358 = vadd.f32 %v326, %v342
        %v359 = vadd.f32 %v327, %v343
        %v360 = vld [vmem:[%s241 + $0x30] sm:$0xff]
        %v361 = vld [vmem:[%s241 + $0x38] sm:$0xff]
        %v362 = vld [vmem:[%s241 + $0xb0] sm:$0xff]
        %v363 = vld [vmem:[%s241 + $0xb8] sm:$0xff]
        %v364 = vld [vmem:[%s241 + $0x130] sm:$0xff]
        %v365 = vld [vmem:[%s241 + $0x138] sm:$0xff]
        %v366 = vld [vmem:[%s241 + $0x1b0] sm:$0xff]
        %v367 = vld [vmem:[%s241 + $0x1b8] sm:$0xff]
        %v368 = vld [vmem:[%s241 + $0x230] sm:$0xff]
        %v369 = vld [vmem:[%s241 + $0x238] sm:$0xff]
        %v370 = vld [vmem:[%s241 + $0x2b0] sm:$0xff]
        %v371 = vld [vmem:[%s241 + $0x2b8] sm:$0xff]
        %v372 = vld [vmem:[%s241 + $0x330] sm:$0xff]
        %v373 = vld [vmem:[%s241 + $0x338] sm:$0xff]
        %v374 = vld [vmem:[%s241 + $0x3b0] sm:$0xff]
        %v375 = vld [vmem:[%s241 + $0x3b8] sm:$0xff]
        %v376 = vadd.f32 %v344, %v360
        %v377 = vadd.f32 %v345, %v361
        %v378 = vadd.f32 %v346, %v362
        %v379 = vadd.f32 %v347, %v363
        %v380 = vadd.f32 %v348, %v364
        %v381 = vadd.f32 %v349, %v365
        %v382 = vadd.f32 %v350, %v366
        %v383 = vadd.f32 %v351, %v367
        %v384 = vadd.f32 %v352, %v368
        %v385 = vadd.f32 %v353, %v369
        %v386 = vadd.f32 %v354, %v370
        %v387 = vadd.f32 %v355, %v371
        %v388 = vadd.f32 %v356, %v372
        %v389 = vadd.f32 %v357, %v373
        %v390 = vadd.f32 %v358, %v374
        %v391 = vadd.f32 %v359, %v375
        %v392 = vld [vmem:[%s241 + $0x40] sm:$0xff]
        %v393 = vld [vmem:[%s241 + $0x48] sm:$0xff]
        %v394 = vld [vmem:[%s241 + $0xc0] sm:$0xff]
        %v395 = vld [vmem:[%s241 + $0xc8] sm:$0xff]
        %v396 = vld [vmem:[%s241 + $0x140] sm:$0xff]
        %v397 = vld [vmem:[%s241 + $0x148] sm:$0xff]
        %v398 = vld [vmem:[%s241 + $0x1c0] sm:$0xff]
        %v399 = vld [vmem:[%s241 + $0x1c8] sm:$0xff]
        %v400 = vld [vmem:[%s241 + $0x240] sm:$0xff]
        %v401 = vld [vmem:[%s241 + $0x248] sm:$0xff]
        %v402 = vld [vmem:[%s241 + $0x2c0] sm:$0xff]
        %v403 = vld [vmem:[%s241 + $0x2c8] sm:$0xff]
        %v404 = vld [vmem:[%s241 + $0x340] sm:$0xff]
        %v405 = vld [vmem:[%s241 + $0x348] sm:$0xff]
        %v406 = vld [vmem:[%s241 + $0x3c0] sm:$0xff]
        %v407 = vld [vmem:[%s241 + $0x3c8] sm:$0xff]
        %v408 = vadd.f32 %v376, %v392
        %v409 = vadd.f32 %v377, %v393
        %v410 = vadd.f32 %v378, %v394
        %v411 = vadd.f32 %v379, %v395
        %v412 = vadd.f32 %v380, %v396
        %v413 = vadd.f32 %v381, %v397
        %v414 = vadd.f32 %v382, %v398
        %v415 = vadd.f32 %v383, %v399
        %v416 = vadd.f32 %v384, %v400
        %v417 = vadd.f32 %v385, %v401
        %v418 = vadd.f32 %v386, %v402
        %v419 = vadd.f32 %v387, %v403
        %v420 = vadd.f32 %v388, %v404
        %v421 = vadd.f32 %v389, %v405
        %v422 = vadd.f32 %v390, %v406
        %v423 = vadd.f32 %v391, %v407
        %v424 = vld [vmem:[%s241 + $0x50] sm:$0xff]
        %v425 = vld [vmem:[%s241 + $0x58] sm:$0xff]
        %v426 = vld [vmem:[%s241 + $0xd0] sm:$0xff]
        %v427 = vld [vmem:[%s241 + $0xd8] sm:$0xff]
        %v428 = vld [vmem:[%s241 + $0x150] sm:$0xff]
        %v429 = vld [vmem:[%s241 + $0x158] sm:$0xff]
        %v430 = vld [vmem:[%s241 + $0x1d0] sm:$0xff]
        %v431 = vld [vmem:[%s241 + $0x1d8] sm:$0xff]
        %v432 = vld [vmem:[%s241 + $0x250] sm:$0xff]
        %v433 = vld [vmem:[%s241 + $0x258] sm:$0xff]
        %v434 = vld [vmem:[%s241 + $0x2d0] sm:$0xff]
        %v435 = vld [vmem:[%s241 + $0x2d8] sm:$0xff]
        %v436 = vld [vmem:[%s241 + $0x350] sm:$0xff]
        %v437 = vld [vmem:[%s241 + $0x358] sm:$0xff]
        %v438 = vld [vmem:[%s241 + $0x3d0] sm:$0xff]
        %v439 = vld [vmem:[%s241 + $0x3d8] sm:$0xff]
        %v440 = vadd.f32 %v408, %v424
        %v441 = vadd.f32 %v409, %v425
        %v442 = vadd.f32 %v410, %v426
        %v443 = vadd.f32 %v411, %v427
        %v444 = vadd.f32 %v412, %v428
        %v445 = vadd.f32 %v413, %v429
        %v446 = vadd.f32 %v414, %v430
        %v447 = vadd.f32 %v415, %v431
        %v448 = vadd.f32 %v416, %v432
        %v449 = vadd.f32 %v417, %v433
        %v450 = vadd.f32 %v418, %v434
        %v451 = vadd.f32 %v419, %v435
        %v452 = vadd.f32 %v420, %v436
        %v453 = vadd.f32 %v421, %v437
        %v454 = vadd.f32 %v422, %v438
        %v455 = vadd.f32 %v423, %v439
        %v456 = vld [vmem:[%s241 + $0x60] sm:$0xff]
        %v457 = vld [vmem:[%s241 + $0x68] sm:$0xff]
        %v458 = vld [vmem:[%s241 + $0xe0] sm:$0xff]
        %v459 = vld [vmem:[%s241 + $0xe8] sm:$0xff]
        %v460 = vld [vmem:[%s241 + $0x160] sm:$0xff]
        %v461 = vld [vmem:[%s241 + $0x168] sm:$0xff]
        %v462 = vld [vmem:[%s241 + $0x1e0] sm:$0xff]
        %v463 = vld [vmem:[%s241 + $0x1e8] sm:$0xff]
        %v464 = vld [vmem:[%s241 + $0x260] sm:$0xff]
        %v465 = vld [vmem:[%s241 + $0x268] sm:$0xff]
        %v466 = vld [vmem:[%s241 + $0x2e0] sm:$0xff]
        %v467 = vld [vmem:[%s241 + $0x2e8] sm:$0xff]
        %v468 = vld [vmem:[%s241 + $0x360] sm:$0xff]
        %v469 = vld [vmem:[%s241 + $0x368] sm:$0xff]
        %v470 = vld [vmem:[%s241 + $0x3e0] sm:$0xff]
        %v471 = vld [vmem:[%s241 + $0x3e8] sm:$0xff]
        %v472 = vadd.f32 %v440, %v456
        %v473 = vadd.f32 %v441, %v457
        %v474 = vadd.f32 %v442, %v458
        %v475 = vadd.f32 %v443, %v459
        %v476 = vadd.f32 %v444, %v460
        %v477 = vadd.f32 %v445, %v461
        %v478 = vadd.f32 %v446, %v462
        %v479 = vadd.f32 %v447, %v463
        %v480 = vadd.f32 %v448, %v464
        %v481 = vadd.f32 %v449, %v465
        %v482 = vadd.f32 %v450, %v466
        %v483 = vadd.f32 %v451, %v467
        %v484 = vadd.f32 %v452, %v468
        %v485 = vadd.f32 %v453, %v469
        %v486 = vadd.f32 %v454, %v470
        %v487 = vadd.f32 %v455, %v471
        %v488 = vld [vmem:[%s241 + $0x70] sm:$0xff]
        %v489 = vld [vmem:[%s241 + $0x78] sm:$0xff]
        %v490 = vld [vmem:[%s241 + $0xf0] sm:$0xff]
        %v491 = vld [vmem:[%s241 + $0xf8] sm:$0xff]
        %v492 = vld [vmem:[%s241 + $0x170] sm:$0xff]
        %v493 = vld [vmem:[%s241 + $0x178] sm:$0xff]
        %v494 = vld [vmem:[%s241 + $0x1f0] sm:$0xff]
        %v495 = vld [vmem:[%s241 + $0x1f8] sm:$0xff]
        %v496 = vld [vmem:[%s241 + $0x270] sm:$0xff]
        %v497 = vld [vmem:[%s241 + $0x278] sm:$0xff]
        %v498 = vld [vmem:[%s241 + $0x2f0] sm:$0xff]
        %v499 = vld [vmem:[%s241 + $0x2f8] sm:$0xff]
        %v500 = vld [vmem:[%s241 + $0x370] sm:$0xff]
        %v501 = vld [vmem:[%s241 + $0x378] sm:$0xff]
        %v502 = vld [vmem:[%s241 + $0x3f0] sm:$0xff]
        %v503 = vld [vmem:[%s241 + $0x3f8] sm:$0xff]
        %v504 = vadd.f32 %v472, %v488
        %v505 = vadd.f32 %v473, %v489
        %v506 = vadd.f32 %v474, %v490
        %v507 = vadd.f32 %v475, %v491
        %v508 = vadd.f32 %v476, %v492
        %v509 = vadd.f32 %v477, %v493
        %v510 = vadd.f32 %v478, %v494
        %v511 = vadd.f32 %v479, %v495
        %v512 = vadd.f32 %v480, %v496
        %v513 = vadd.f32 %v481, %v497
        %v514 = vadd.f32 %v482, %v498
        %v515 = vadd.f32 %v483, %v499
        %v516 = vadd.f32 %v484, %v500
        %v517 = vadd.f32 %v485, %v501
        %v518 = vadd.f32 %v486, %v502
        %v519 = vadd.f32 %v487, %v503
        %v520 = vld [vmem:[#allocation7] sm:$0xff]
        %v521 = vld [vmem:[#allocation7 + $0x8] sm:$0xff]
        %v522 = vld [vmem:[#allocation7 + $0x10] sm:$0xff]
        %v523 = vld [vmem:[#allocation7 + $0x18] sm:$0xff]
        %v524 = vld [vmem:[#allocation7 + $0x20] sm:$0xff]
        %v525 = vld [vmem:[#allocation7 + $0x28] sm:$0xff]
        %v526 = vld [vmem:[#allocation7 + $0x30] sm:$0xff]
        %v527 = vld [vmem:[#allocation7 + $0x38] sm:$0xff]
        %v528 = vld [vmem:[#allocation7 + $0x40] sm:$0xff]
        %v529 = vld [vmem:[#allocation7 + $0x48] sm:$0xff]
        %v530 = vld [vmem:[#allocation7 + $0x50] sm:$0xff]
        %v531 = vld [vmem:[#allocation7 + $0x58] sm:$0xff]
        %v532 = vld [vmem:[#allocation7 + $0x60] sm:$0xff]
        %v533 = vld [vmem:[#allocation7 + $0x68] sm:$0xff]
        %v534 = vld [vmem:[#allocation7 + $0x70] sm:$0xff]
        %v535 = vld [vmem:[#allocation7 + $0x78] sm:$0xff]
        %v536 = vld [vmem:[#allocation7 + $0x80] sm:$0xff]
        %v537 = vld [vmem:[#allocation7 + $0x88] sm:$0xff]
        %v538 = vld [vmem:[#allocation7 + $0x90] sm:$0xff]
        %v539 = vld [vmem:[#allocation7 + $0x98] sm:$0xff]
        %v540 = vld [vmem:[#allocation7 + $0xa0] sm:$0xff]
        %v541 = vld [vmem:[#allocation7 + $0xa8] sm:$0xff]
        %v542 = vld [vmem:[#allocation7 + $0xb0] sm:$0xff]
        %v543 = vld [vmem:[#allocation7 + $0xb8] sm:$0xff]
        %v544 = vld [vmem:[#allocation7 + $0xc0] sm:$0xff]
        %v545 = vld [vmem:[#allocation7 + $0xc8] sm:$0xff]
        %v546 = vld [vmem:[#allocation7 + $0xd0] sm:$0xff]
        %v547 = vld [vmem:[#allocation7 + $0xd8] sm:$0xff]
        %v548 = vld [vmem:[#allocation7 + $0xe0] sm:$0xff]
        %v549 = vld [vmem:[#allocation7 + $0xe8] sm:$0xff]
        %v550 = vld [vmem:[#allocation7 + $0xf0] sm:$0xff]
        %v551 = vld [vmem:[#allocation7 + $0xf8] sm:$0xff]
        %552 = vmatpush.msra.mxu0 %v535
        %553 = vmatpush.msra.mxu0 %v534
        %554 = vmatpush.msra.mxu0 %v533
        %555 = vmatpush.msra.mxu0 %v532
        %556 = vmatpush.msra.mxu0 %v531
        %557 = vmatpush.msra.mxu0 %v530
        %558 = vmatpush.msra.mxu0 %v529
        %559 = vmatpush.msra.mxu0 %v528
        %560 = vmatpush.msra.mxu0 %v527
        %561 = vmatpush.msra.mxu0 %v526
        %562 = vmatpush.msra.mxu0 %v525
        %563 = vmatpush.msra.mxu0 %v524
        %564 = vmatpush.msra.mxu0 %v523
        %565 = vmatpush.msra.mxu0 %v522
        %566 = vmatpush.msra.mxu0 %v521
        %567 = vmatpush.msra.mxu0 %v520
        %568 = vmatmul.f32.gmra.mxu0 %v504
        %v569 = vpop.f32.mrf.mxu0
        %v570 = vadd.f32 0.0, %v569
        %571 = vmatmul.f32.gmra.mxu0 %v506
        %v572 = vpop.f32.mrf.mxu0
        %v573 = vadd.f32 0.0, %v572
        %574 = vmatmul.f32.gmra.mxu0 %v508
        %v575 = vpop.f32.mrf.mxu0
        %v576 = vadd.f32 0.0, %v575
        %577 = vmatmul.f32.gmra.mxu0 %v510
        %v578 = vpop.f32.mrf.mxu0
        %v579 = vadd.f32 0.0, %v578
        %580 = vmatmul.f32.gmra.mxu0 %v512
        %v581 = vpop.f32.mrf.mxu0
        %v582 = vadd.f32 0.0, %v581
        %583 = vmatmul.f32.gmra.mxu0 %v514
        %v584 = vpop.f32.mrf.mxu0
        %v585 = vadd.f32 0.0, %v584
        %586 = vmatmul.f32.gmra.mxu0 %v516
        %v587 = vpop.f32.mrf.mxu0
        %v588 = vadd.f32 0.0, %v587
        %589 = vmatmul.f32.gmra.mxu0 %v518
        %v590 = vpop.f32.mrf.mxu0
        %v591 = vadd.f32 0.0, %v590
        %592 = vdwg.mxu0
        %593 = vmatpush.msra.mxu0 %v551
        %594 = vmatpush.msra.mxu0 %v550
        %595 = vmatpush.msra.mxu0 %v549
        %596 = vmatpush.msra.mxu0 %v548
        %597 = vmatpush.msra.mxu0 %v547
        %598 = vmatpush.msra.mxu0 %v546
        %599 = vmatpush.msra.mxu0 %v545
        %600 = vmatpush.msra.mxu0 %v544
        %601 = vmatpush.msra.mxu0 %v543
        %602 = vmatpush.msra.mxu0 %v542
        %603 = vmatpush.msra.mxu0 %v541
        %604 = vmatpush.msra.mxu0 %v540
        %605 = vmatpush.msra.mxu0 %v539
        %606 = vmatpush.msra.mxu0 %v538
        %607 = vmatpush.msra.mxu0 %v537
        %608 = vmatpush.msra.mxu0 %v536
        %609 = vmatmul.f32.gmra.mxu0 %v505
        %v610 = vpop.f32.mrf.mxu0
        %v611 = vadd.f32 %v570, %v610
        %612 = vmatmul.f32.gmra.mxu0 %v507
        %v613 = vpop.f32.mrf.mxu0
        %v614 = vadd.f32 %v573, %v613
        %615 = vmatmul.f32.gmra.mxu0 %v509
        %v616 = vpop.f32.mrf.mxu0
        %v617 = vadd.f32 %v576, %v616
        %618 = vmatmul.f32.gmra.mxu0 %v511
        %v619 = vpop.f32.mrf.mxu0
        %v620 = vadd.f32 %v579, %v619
        %621 = vmatmul.f32.gmra.mxu0 %v513
        %v622 = vpop.f32.mrf.mxu0
        %v623 = vadd.f32 %v582, %v622
        %624 = vmatmul.f32.gmra.mxu0 %v515
        %v625 = vpop.f32.mrf.mxu0
        %v626 = vadd.f32 %v585, %v625
        %627 = vmatmul.f32.gmra.mxu0 %v517
        %v628 = vpop.f32.mrf.mxu0
        %v629 = vadd.f32 %v588, %v628
        %630 = vmatmul.f32.gmra.mxu0 %v519
        %v631 = vpop.f32.mrf.mxu0
        %v632 = vadd.f32 %v591, %v631
        %633 = vdwg.mxu0
        %v634 = vld [vmem:[%s231] sm:$0xff]
        %v635 = vld [vmem:[%s231 + $0x8] sm:$0xff]
        %v636 = vld [vmem:[%s231 + $0x10] sm:$0xff]
        %v637 = vld [vmem:[%s231 + $0x18] sm:$0xff]
        %v638 = vld [vmem:[%s231 + $0x20] sm:$0xff]
        %v639 = vld [vmem:[%s231 + $0x28] sm:$0xff]
        %v640 = vld [vmem:[%s231 + $0x30] sm:$0xff]
        %v641 = vld [vmem:[%s231 + $0x38] sm:$0xff]
        %v642 = vadd.f32 %v634, %v611
        %v643 = vadd.f32 %v635, %v614
        %v644 = vadd.f32 %v636, %v617
        %v645 = vadd.f32 %v637, %v620
        %v646 = vadd.f32 %v638, %v623
        %v647 = vadd.f32 %v639, %v626
        %v648 = vadd.f32 %v640, %v629
        %v649 = vadd.f32 %v641, %v632
        %v650 = vld [vmem:[%s3] sm:$0x1]
        %v652 = vperm.slane %v650, 0
        %v654 = vadd.f32 %v642, %v652
        %v655 = vadd.f32 %v643, %v652
        %v656 = vadd.f32 %v644, %v652
        %v657 = vadd.f32 %v645, %v652
        %v658 = vadd.f32 %v646, %v652
        %v659 = vadd.f32 %v647, %v652
        %v660 = vadd.f32 %v648, %v652
        %v661 = vadd.f32 %v649, %v652
        %662 = vst [vmem:[%s276] sm:$0xff] %v654
        %663 = vst [vmem:[%s276 + $0x8] sm:$0xff] %v655
        %664 = vst [vmem:[%s276 + $0x10] sm:$0xff] %v656
        %665 = vst [vmem:[%s276 + $0x18] sm:$0xff] %v657
        %666 = vst [vmem:[%s276 + $0x20] sm:$0xff] %v658
        %667 = vst [vmem:[%s276 + $0x28] sm:$0xff] %v659
        %668 = vst [vmem:[%s276 + $0x30] sm:$0xff] %v660
        %669 = vst [vmem:[%s276 + $0x38] sm:$0xff] %v661
        %s670 = sand.u32 %s126, 1
        %s671 = scalar_lea.sflag [#allocation4], %s670
        %s672 = sand.u32 %s126, 1
        %s673 = smul.addr %s672, 64
        %s674 = scalar_lea.vmem [#allocation8], %s673
        // Predicated region
        $region49: #{tpu_custom_call.1} parent=35 // pred_check
          %p675 = pneg %p136
        $region50: #{tpu_custom_call.1} parent=35 // pred_check_branch
          %677 = sbr.rel (%p675) target = $region52
        $region51: #{tpu_custom_call.1} parent=35 // pred_region
          %s678 = smul.u32 8, %s24
          %680 = vsyncadd %s671, 0
          %s681 = smul.addr %s678, 8
          %s682 = scalar_lea.hbm %s4, %s681
          %s683 = sshll.u32 %s674, 4
          %s684 = int_to_ptr.vmem [resolvable:$true] %s683
          %s685 = sshll.u32 %s682, 4
          %s686 = int_to_ptr.hbm [resolvable:$true] %s685
          %691 = dma.vmem_to_hbm [thread:$0]  %s684, 1024, %s686, %s671, 128, 128, 8
        $region52: #{tpu_custom_call.1} parent=35 // pred_fallthru
          _
      $region36: #{tpu_custom_call.1} parent=5 // pred_fallthru
        _
      %p692 = scmp.le.s32.totalorder 2, %s19
      // Predicated region
      $region53: #{tpu_custom_call.1} parent=5 // pred_check
        %p693 = pneg %p692
      $region54: #{tpu_custom_call.1} parent=5 // pred_check_branch
        %695 = sbr.rel (%p693) target = $region56
      $region55: #{tpu_custom_call.1} parent=5 // pred_region
        %s696 = ssub.s32 %s19, 2
        // Predicated region
        $region57: #{tpu_custom_call.1} parent=55 // pred_check
          %p697 = pneg %p142
        $region58: #{tpu_custom_call.1} parent=55 // pred_check_branch
          %699 = sbr.rel (%p697) target = $region60
        $region59: #{tpu_custom_call.1} parent=55 // pred_region
          %s700 = sand.u32 %s127, 1
          %s701 = scalar_lea.sflag [#allocation4], %s700
          %s702 = sand.u32 %s127, 1
          %s703 = smul.addr %s702, 64
          %s704 = scalar_lea.vmem [#allocation8], %s703
          %706 = dma.done %s701, 1024
        $region60: #{tpu_custom_call.1} parent=55 // pred_fallthru
          _
      $region56: #{tpu_custom_call.1} parent=5 // pred_fallthru
        _
    $region6: #{tpu_custom_call.1} parent=1 // loop_footer
      %s23 = sadd.s32 1, %s19
    $region7: #{tpu_custom_call.1} parent=1 // loop_footer_branch
      %18 = sbr.rel target = $region3
    $region8: #{tpu_custom_call.1} parent=1 // loop_exit
      _
    %707 = vsyncpa [#allocation3], 1
    %s708 = scalar_lea.sflag [#allocation3], 1
    %709 = vsyncpa %s708, 1
    %710 = vsyncpa [#allocation6], 1
    %s711 = scalar_lea.sflag [#allocation6], 1
    %712 = vsyncpa %s711, 1
    %713 = vsyncpa [#allocation4], 1
    %s714 = scalar_lea.sflag [#allocation4], 1
    %715 = vsyncpa %s714, 1

</llo_original>
